<compile_context>
chip_gen: v7x
topology: tpu7x:2x2x1
jax: 0.10.0
libtpu: 0.0.40
codegen_flags: <defaults>
</compile_context>

<pallas_src>
import jax
import jax.numpy as jnp
from jax.experimental import pallas as pl
from jax.experimental.pallas import tpu as pltpu

BN_EPS = 1e-5


def _projection_head_kernel(x_ref, w1_ref, gb_ref, w2_ref, b2_ref, o_ref, acc_ref):
    h_step = pl.program_id(1)
    n_h = pl.num_programs(1)

    @pl.when(h_step == 0)
    def _():
        acc_ref[...] = jnp.zeros_like(acc_ref)

    # ---- Linear 1 on this H tile (bias omitted: cancelled by training-mode BN) ----
    # x_ref: [B, Dp], w1_ref: [Dp, Ht]; bf16 MXU operands, f32 accumulation.
    h = jnp.dot(x_ref[...], w1_ref[...], preferred_element_type=jnp.float32)  # [B, Ht]

    # ---- BatchNorm1d (training mode, biased batch variance), single-pass stats ----
    inv_b = 1.0 / h.shape[0]
    mean = jnp.sum(h, axis=0, keepdims=True) * inv_b                  # [1, Ht]
    ex2 = jnp.sum(h * h, axis=0, keepdims=True) * inv_b               # [1, Ht]
    var = jnp.maximum(ex2 - mean * mean, 0.0)                         # clamp f32 rounding
    gamma = gb_ref[0:1, :]
    beta = gb_ref[1:2, :]
    s = gamma * jax.lax.rsqrt(var + BN_EPS)                           # per-feature scale (f32)
    t = beta - mean * s                                               # per-feature shift (f32)

    # ---- Fused scale/shift + ReLU in the matmul-operand dtype (bf16 VALU on v6e/v7x) ----
    cdt = w2_ref.dtype
    a = jnp.maximum(h.astype(cdt) * s.astype(cdt) + t.astype(cdt), 0.0)   # [B, Ht]

    # ---- Linear 2 partial product for this H tile -> f32 accumulator ----
    acc_ref[...] += jnp.dot(a, w2_ref[...], preferred_element_type=jnp.float32)

    @pl.when(h_step == n_h - 1)
    def _():
        o_ref[...] = (acc_ref[...] + b2_ref[...]).astype(o_ref.dtype)


def projection_head(x, w1, gamma, beta, w2, b2, *, block_h=512):
    """SimCLR ProjectionHead forward: Linear -> BatchNorm1d(train) -> ReLU -> Linear.

    x: [B, D] or [N, B, D]; each micro-batch is normalized with its own batch
    statistics (one PyTorch forward() call per micro-batch).
    Returns f32 [B, P] / [N, B, P].  x/w1/w2 may be bf16 (recommended) or f32.
    """
    squeeze = (x.ndim == 2)
    if squeeze:
        x = x[None]
    N, B, D = x.shape
    H = w1.shape[1]
    P = w2.shape[1]

    # Lane-pad the contraction dim D to a multiple of 128 (zero rows/cols are an
    # exact no-op for the matmul but make the x DMA / vld lane-dense).
    Dp = ((D + 127) // 128) * 128
    if Dp != D:
        x = jnp.pad(x, ((0, 0), (0, 0), (0, Dp - D)))
        w1 = jnp.pad(w1, ((0, Dp - D), (0, 0)))

    # H tile: multiple of 128 that divides H; fall back to full H otherwise.
    block_h = min(block_h, H)
    if H % block_h != 0 or block_h % 128 != 0:
        block_h = H
    n_h = H // block_h

    # gamma/beta packed into one [2, H] f32 array (one streamed DMA per H tile).
    gb = jnp.stack([gamma.reshape(H).astype(jnp.float32),
                    beta.reshape(H).astype(jnp.float32)])
    b2v = b2.reshape(1, P).astype(jnp.float32)

    # TODO(synk): at real SimCLR sizes (B~4096, H=2048) also set vmem_limit_bytes
    # in CompilerParams (default scoped VMEM: ~16 MiB v5e / 32 MiB v6e/v7x).
    out = pl.pallas_call(
        _projection_head_kernel,
        out_shape=jax.ShapeDtypeStruct((N, B, P), jnp.float32),
        grid_spec=pltpu.PrefetchScalarGridSpec(
            num_scalar_prefetch=0,
            grid=(N, n_h),                                   # reduction axis last
            in_specs=[
                # x: one micro-batch, constant over the H axis -> DMA'd once per n.
                pl.BlockSpec((None, B, Dp), lambda n, h: (n, 0, 0)),
                # Weight / vector tiles stream along H.
                pl.BlockSpec((Dp, block_h), lambda n, h: (0, h)),
                pl.BlockSpec((2, block_h), lambda n, h: (0, h)),
                pl.BlockSpec((block_h, P), lambda n, h: (h, 0)),
                # b2: tiny, grid-constant.
                pl.BlockSpec((1, P), lambda n, h: (0, 0)),
            ],
            out_specs=pl.BlockSpec((None, B, P), lambda n, h: (n, 0, 0)),
            scratch_shapes=[pltpu.VMEM((B, P), jnp.float32)],
        ),
        compiler_params=pltpu.CompilerParams(
            # Micro-batches independent -> megacore split on v7x; H is a reduction.
            dimension_semantics=("parallel", "arbitrary")),
    )(x, w1, gb, w2, b2v)

    return out[0] if squeeze else out


def init_params(key, input_dim, hidden_dim, proj_dim):
    """PyTorch-like init; gamma/beta perturbed from (1, 0) so the BN affine path
    is actually exercised by the correctness check."""
    k1, k2, k3, k4, k5, k6 = jax.random.split(key, 6)
    lim1 = 1.0 / jnp.sqrt(input_dim)
    lim2 = 1.0 / jnp.sqrt(hidden_dim)
    w1 = jax.random.uniform(k1, (input_dim, hidden_dim), jnp.float32, -lim1, lim1)
    b1 = jax.random.uniform(k2, (hidden_dim,), jnp.float32, -lim1, lim1)
    gamma = 1.0 + 0.1 * jax.random.normal(k5, (hidden_dim,), jnp.float32)
    beta = 0.1 * jax.random.normal(k6, (hidden_dim,), jnp.float32)
    w2 = jax.random.uniform(k3, (hidden_dim, proj_dim), jnp.float32, -lim2, lim2)
    b2 = jax.random.uniform(k4, (proj_dim,), jnp.float32, -lim2, lim2)
    return w1, b1, gamma, beta, w2, b2


def reference(x, w1, b1, gamma, beta, w2, b2):
    """PyTorch-faithful forward (Linear bias=True, training-mode BN, f32 BN math),
    using the same bf16 matmul operands as the kernel.  b1 is included here to
    show it cancels under training-mode BN (the kernel omits it)."""
    h = jnp.dot(x, w1, preferred_element_type=jnp.float32) + b1
    mean = jnp.mean(h, axis=0, keepdims=True)
    var = jnp.mean((h - mean) ** 2, axis=0, keepdims=True)
    h = (h - mean) * jax.lax.rsqrt(var + BN_EPS) * gamma + beta
    h = jnp.maximum(h, 0.0)
    return jnp.dot(h.astype(w2.dtype), w2, preferred_element_type=jnp.float32) + b2


if __name__ == "__main__":
    # Small shapes consistent with ProjectionHead(input_dim=64, hidden_dim=256,
    # proj_dim=128); N=2 independent micro-batches (the two SimCLR views run as
    # separate forward calls), B=128 rows.  block_h=128 so the demo exercises
    # the H-axis accumulation path (2 H steps per micro-batch).
    N, B, D_IN, HIDDEN, PROJ = 2, 128, 64, 256, 128

    key = jax.random.PRNGKey(0)
    kx, kp = jax.random.split(key)
    x = jax.random.normal(kx, (N, B, D_IN), jnp.float32)
    w1, b1, gamma, beta, w2, b2 = init_params(kp, D_IN, HIDDEN, PROJ)

    # bf16 matmul operands (half the weight/x DMA bytes, native MXU rate on all
    # generations); BN statistics stay f32 inside the kernel.
    x_bf = x.astype(jnp.bfloat16)
    w1_bf = w1.astype(jnp.bfloat16)
    w2_bf = w2.astype(jnp.bfloat16)

    out = projection_head(x_bf, w1_bf, gamma, beta, w2_bf, b2, block_h=128)
    out = jax.block_until_ready(out)

    ref = jnp.stack([reference(x_bf[i], w1_bf, b1, gamma, beta, w2_bf, b2)
                     for i in range(N)])

    assert out.shape == (N, B, PROJ)
    # Tolerance covers (a) dropping b1 in-kernel (exact cancellation up to f32
    # rounding) and (b) the fused scale/shift+ReLU running in bf16 in the kernel
    # vs f32 in the reference.
    err = float(jnp.max(jnp.abs(out - ref)))
    assert jnp.allclose(out, ref, atol=1e-2, rtol=1e-2), \
        f"mismatch vs JAX reference: max abs err = {err}"

    print("KERNEL_OK")
</pallas_src>

<mosaic_0001>
module attributes {stable_mosaic.version = 11 : i64} {
  func.func @_projection_head_kernel(%arg0: i32, %arg1: i32, %arg2: memref<1x128x128xbf16, #tpu.memory_space<vmem>>, %arg3: memref<128x128xbf16, #tpu.memory_space<vmem>>, %arg4: memref<2x128xf32, #tpu.memory_space<vmem>>, %arg5: memref<128x128xbf16, #tpu.memory_space<vmem>>, %arg6: memref<1x128xf32, #tpu.memory_space<vmem>>, %arg7: memref<1x128x128xf32, #tpu.memory_space<vmem>>, %arg8: memref<128x128xf32, #tpu.memory_space<vmem>>) attributes {dimension_semantics = [#tpu.dimension_semantics<parallel>, #tpu.dimension_semantics<arbitrary>], iteration_bounds = array<i64: 2, 2>, scalar_prefetch = 0 : i64, scratch_operands = 1 : i64, tpu.core_type = #tpu.core_type<tc>, window_params = [{transform_indices = @transform_0, window_bounds = array<i64: 1, 128, 128>}, {transform_indices = @transform_1, window_bounds = array<i64: 128, 128>}, {transform_indices = @transform_2, window_bounds = array<i64: 2, 128>}, {transform_indices = @transform_3, window_bounds = array<i64: 128, 128>}, {pipeline_mode = #tpu.pipeline_mode<synchronous>, transform_indices = @transform_4, window_bounds = array<i64: 1, 128>}, {transform_indices = @transform_5, window_bounds = array<i64: 1, 128, 128>}]} {
    %c0_i32 = arith.constant 0 : i32
    %0 = arith.cmpi eq, %arg1, %c0_i32 : i32
    %1 = arith.extui %0 : i1 to i32
    %c0_i32_0 = arith.constant 0 : i32
    %2 = arith.cmpi ne, %1, %c0_i32_0 : i32
    scf.if %2 {
      %cst_23 = arith.constant 0.000000e+00 : f32
      %45 = vector.broadcast %cst_23 : f32 to vector<128x128xf32>
      %c0_24 = arith.constant 0 : index
      %c0_25 = arith.constant 0 : index
      %46 = vector.load %arg8[%c0_24, %c0_25] : memref<128x128xf32, #tpu.memory_space<vmem>>, vector<128x128xf32>
      tpu.vector_store %arg8[%c0_24, %c0_25], %45 {strides = array<i32>} : memref<128x128xf32, #tpu.memory_space<vmem>>, vector<128x128xf32>,
    } else {
    }
    %c0 = arith.constant 0 : index
    %c0_1 = arith.constant 0 : index
    %c0_2 = arith.constant 0 : index
    %3 = vector.load %arg2[%c0, %c0_1, %c0_2] : memref<1x128x128xbf16, #tpu.memory_space<vmem>>, vector<1x128x128xbf16>
    %4 = vector.shape_cast %3 : vector<1x128x128xbf16> to vector<128x128xbf16>
    %c0_3 = arith.constant 0 : index
    %c0_4 = arith.constant 0 : index
    %5 = vector.load %arg3[%c0_3, %c0_4] : memref<128x128xbf16, #tpu.memory_space<vmem>>, vector<128x128xbf16>
    %cst = arith.constant dense<0.000000e+00> : vector<128x128xf32>
    %6 = tpu.matmul %4, %5, %cst {dimension_numbers = #tpu.dot_dimension_numbers<[1], [0], [0], [1], [0, 0, 1, 1], [], []>} : vector<128x128xbf16>, vector<128x128xbf16>, vector<128x128xf32> -> vector<128x128xf32>
    %cst_5 = arith.constant dense<0.000000e+00> : vector<128xf32>
    %7 = vector.multi_reduction <add>, %6, %cst_5 [0] : vector<128x128xf32> to vector<128xf32>
    %8 = vector.shape_cast %7 : vector<128xf32> to vector<1x128xf32>
    %cst_6 = arith.constant 7.812500e-03 : f32
    %9 = vector.broadcast %cst_6 : f32 to vector<1x128xf32>
    %10 = arith.mulf %8, %9 : vector<1x128xf32>
    %11 = arith.mulf %6, %6 : vector<128x128xf32>
    %cst_7 = arith.constant dense<0.000000e+00> : vector<128xf32>
    %12 = vector.multi_reduction <add>, %11, %cst_7 [0] : vector<128x128xf32> to vector<128xf32>
    %13 = vector.shape_cast %12 : vector<128xf32> to vector<1x128xf32>
    %cst_8 = arith.constant 7.812500e-03 : f32
    %14 = vector.broadcast %cst_8 : f32 to vector<1x128xf32>
    %15 = arith.mulf %13, %14 : vector<1x128xf32>
    %16 = arith.mulf %10, %10 : vector<1x128xf32>
    %17 = arith.subf %15, %16 : vector<1x128xf32>
    %cst_9 = arith.constant 0.000000e+00 : f32
    %18 = vector.broadcast %cst_9 : f32 to vector<1x128xf32>
    %19 = arith.maximumf %17, %18 : vector<1x128xf32>
    %c0_10 = arith.constant 0 : index
    %c0_11 = arith.constant 0 : index
    %20 = vector.load %arg4[%c0_10, %c0_11] : memref<2x128xf32, #tpu.memory_space<vmem>>, vector<1x128xf32>
    %c1 = arith.constant 1 : index
    %c0_12 = arith.constant 0 : index
    %21 = vector.load %arg4[%c1, %c0_12] : memref<2x128xf32, #tpu.memory_space<vmem>>, vector<1x128xf32>
    %cst_13 = arith.constant 9.99999974E-6 : f32
    %22 = vector.broadcast %cst_13 : f32 to vector<1x128xf32>
    %23 = arith.addf %19, %22 : vector<1x128xf32>
    %24 = math.rsqrt %23 : vector<1x128xf32>
    %25 = arith.mulf %20, %24 : vector<1x128xf32>
    %26 = arith.mulf %10, %25 : vector<1x128xf32>
    %27 = arith.subf %21, %26 : vector<1x128xf32>
    %28 = arith.truncf %6 : vector<128x128xf32> to vector<128x128xbf16>
    %29 = arith.truncf %25 : vector<1x128xf32> to vector<1x128xbf16>
    %30 = vector.broadcast %29 : vector<1x128xbf16> to vector<128x128xbf16>
    %31 = arith.mulf %28, %30 : vector<128x128xbf16>
    %32 = arith.truncf %27 : vector<1x128xf32> to vector<1x128xbf16>
    %33 = vector.broadcast %32 : vector<1x128xbf16> to vector<128x128xbf16>
    %34 = arith.addf %31, %33 : vector<128x128xbf16>
    %cst_14 = arith.constant 0.000000e+00 : bf16
    %35 = vector.broadcast %cst_14 : bf16 to vector<128x128xbf16>
    %36 = arith.maximumf %34, %35 : vector<128x128xbf16>
    %c0_15 = arith.constant 0 : index
    %c0_16 = arith.constant 0 : index
    %37 = vector.load %arg8[%c0_15, %c0_16] : memref<128x128xf32, #tpu.memory_space<vmem>>, vector<128x128xf32>
    %c0_17 = arith.constant 0 : index
    %c0_18 = arith.constant 0 : index
    %38 = vector.load %arg5[%c0_17, %c0_18] : memref<128x128xbf16, #tpu.memory_space<vmem>>, vector<128x128xbf16>
    %cst_19 = arith.constant dense<0.000000e+00> : vector<128x128xf32>
    %39 = tpu.matmul %36, %38, %cst_19 {dimension_numbers = #tpu.dot_dimension_numbers<[1], [0], [0], [1], [0, 0, 1, 1], [], []>} : vector<128x128xbf16>, vector<128x128xbf16>, vector<128x128xf32> -> vector<128x128xf32>
    %40 = arith.addf %37, %39 : vector<128x128xf32>
    %c0_20 = arith.constant 0 : index
    %c0_21 = arith.constant 0 : index
    %41 = vector.load %arg8[%c0_20, %c0_21] : memref<128x128xf32, #tpu.memory_space<vmem>>, vector<128x128xf32>
    tpu.vector_store %arg8[%c0_20, %c0_21], %40 {strides = array<i32>} : memref<128x128xf32, #tpu.memory_space<vmem>>, vector<128x128xf32>,
    %c1_i32 = arith.constant 1 : i32
    %42 = arith.cmpi eq, %arg1, %c1_i32 : i32
    %43 = arith.extui %42 : i1 to i32
    %c0_i32_22 = arith.constant 0 : i32
    %44 = arith.cmpi ne, %43, %c0_i32_22 : i32
    scf.if %44 {
      %c0_23 = arith.constant 0 : index
      %c0_24 = arith.constant 0 : index
      %45 = vector.load %arg8[%c0_23, %c0_24] : memref<128x128xf32, #tpu.memory_space<vmem>>, vector<128x128xf32>
      %c0_25 = arith.constant 0 : index
      %c0_26 = arith.constant 0 : index
      %46 = vector.load %arg6[%c0_25, %c0_26] : memref<1x128xf32, #tpu.memory_space<vmem>>, vector<1x128xf32>
      %47 = vector.broadcast %46 : vector<1x128xf32> to vector<128x128xf32>
      %48 = arith.addf %45, %47 : vector<128x128xf32>
      %c0_27 = arith.constant 0 : index
      %c0_28 = arith.constant 0 : index
      %c0_29 = arith.constant 0 : index
      %49 = vector.load %arg7[%c0_27, %c0_28, %c0_29] : memref<1x128x128xf32, #tpu.memory_space<vmem>>, vector<1x128x128xf32>
      %50 = vector.shape_cast %49 : vector<1x128x128xf32> to vector<128x128xf32>
      %51 = vector.shape_cast %48 : vector<128x128xf32> to vector<1x128x128xf32>
      tpu.vector_store %arg7[%c0_27, %c0_28, %c0_29], %51 {strides = array<i32>} : memref<1x128x128xf32, #tpu.memory_space<vmem>>, vector<1x128x128xf32>,
    } else {
    }
    return
  }
  func.func @transform_0(%arg0: i32, %arg1: i32) -> (i32, i32, i32) {
    %c0_i32 = arith.constant 0 : i32
    %c0_i32_0 = arith.constant 0 : i32
    %c0_i32_1 = arith.constant 0 : i32
    return %arg0, %c0_i32, %c0_i32_0 : i32, i32, i32
  }
  func.func @transform_1(%arg0: i32, %arg1: i32) -> (i32, i32) {
    %c0_i32 = arith.constant 0 : i32
    %c0_i32_0 = arith.constant 0 : i32
    return %c0_i32, %arg1 : i32, i32
  }
  func.func @transform_2(%arg0: i32, %arg1: i32) -> (i32, i32) {
    %c0_i32 = arith.constant 0 : i32
    %c0_i32_0 = arith.constant 0 : i32
    return %c0_i32, %arg1 : i32, i32
  }
  func.func @transform_3(%arg0: i32, %arg1: i32) -> (i32, i32) {
    %c0_i32 = arith.constant 0 : i32
    %c0_i32_0 = arith.constant 0 : i32
    return %arg1, %c0_i32 : i32, i32
  }
  func.func @transform_4(%arg0: i32, %arg1: i32) -> (i32, i32) {
    %c0_i32 = arith.constant 0 : i32
    %c0_i32_0 = arith.constant 0 : i32
    %c0_i32_1 = arith.constant 0 : i32
    return %c0_i32, %c0_i32_0 : i32, i32
  }
  func.func @transform_5(%arg0: i32, %arg1: i32) -> (i32, i32, i32) {
    %c0_i32 = arith.constant 0 : i32
    %c0_i32_0 = arith.constant 0 : i32
    %c0_i32_1 = arith.constant 0 : i32
    return %arg0, %c0_i32, %c0_i32_0 : i32, i32, i32
  }
}

</mosaic_0001>

<llo_original>
// kernel: tpu_custom_call.1
$region0: #{tpu_custom_call.1}
  #allocation0 [shape = 'u32[]', space=smem, size = 0x4, offset = 0x4, fixed_abs, tag = 'smem constant byte address 0x4 - core index']
  #allocation1 [shape = 'u32[144,128]{1,0:T(1,128)}', space=vmem, size = 0x12000, scoped, tag = 'internal scratch']
  #allocation2 [shape = 'f32[128,128]{1,0:T(8,128)}', space=vmem, size = 0x10000, scoped, tag = 'scratch operand']
  %s0 = inlined_call_operand.hbm [shape: bf16[2,128,128], index: 0, kind: input, shape index: {}]
  %s1 = inlined_call_operand.hbm [shape: bf16[128,256], index: 1, kind: input, shape index: {}]
  %s2 = inlined_call_operand.vmem [shape: f32[2,256], index: 2, kind: input, shape index: {}]
  %s3 = inlined_call_operand.hbm [shape: bf16[256,128], index: 3, kind: input, shape index: {}]
  %s4 = inlined_call_operand.vmem [shape: f32[1,128], index: 4, kind: input, shape index: {}]
  %s5 = inlined_call_operand.hbm [shape: f32[2,128,128], index: 5, kind: output, shape index: {}]
  %s6 = sld [smem:[#allocation0]]
  $region73: #{tpu_custom_call.1} parent=0
    _
  %s8 = ssub.s32 1, %s6
  %s9 = scalar_select 0, %s8, %s6
  $region1: #{tpu_custom_call.1} parent=0
    #allocation3 [shape = 'u8[65536]{0}', space=vmem, size = 0x10000, scoped, tag = 'input window, operand 0']
    #allocation4 [shape = 's32[2]{0}', space=sflag, size = 0x8, scoped, tag = 'scoped memory for tpu_custom_call.1']
    #allocation5 [shape = 's32[2]{0}', space=sflag, size = 0x8, scoped, tag = 'scoped memory for tpu_custom_call.1']
    #allocation6 [shape = 'u8[65536]{0}', space=vmem, size = 0x10000, scoped, tag = 'input window, operand 1']
    #allocation7 [shape = 's32[2]{0}', space=sflag, size = 0x8, scoped, tag = 'scoped memory for tpu_custom_call.1']
    #allocation8 [shape = 'u8[65536]{0}', space=vmem, size = 0x10000, scoped, tag = 'input window, operand 3']
    #allocation9 [shape = 'u8[131072]{0}', space=vmem, size = 0x20000, scoped, tag = 'output window, operand 0']
    %10 = vsyncpa [#allocation4], 0
    %s11 = scalar_lea.sflag [#allocation4], 1
    %12 = vsyncpa %s11, 0
    %13 = vsyncpa [#allocation7], 0
    %s14 = scalar_lea.sflag [#allocation7], 1
    %15 = vsyncpa %s14, 0
    %16 = vsyncpa [#allocation5], 0
    %s17 = scalar_lea.sflag [#allocation5], 1
    %18 = vsyncpa %s17, 0
    loop: start=0, step=1, limit=6
    $region2: #{tpu_custom_call.1} parent=1 // loop_pre_header
      _
    $region3: #{tpu_custom_call.1} parent=1 // loop_header
      %s20 = sphi 0, %s24
      %p21 = scmp.ge.s32.totalorder %s20, 6
      %s27 = sphi 0, %s39
      %s28 = sphi 0, %s35
      %s29 = sphi 0, %s27
      %s30 = sphi 0, %s28
      %s31 = sphi 0, %s29
      %s32 = sphi 0, %s30
      %s42 = sphi 0, %s44
      %s45 = sphi 0, %s42
      %s46 = sphi 0, %s45
      %s62 = sphi 0, %s46
      %s68 = sphi 0, %s70
      %s71 = sphi 0, %s68
      %s72 = sphi 0, %s71
      %s88 = sphi 0, %s72
      %s94 = sphi 0, %s96
      %s97 = sphi 0, %s94
      %s98 = sphi 0, %s97
      %s114 = sphi 0, %s98
      %s120 = sphi 0, %s122
      %s123 = sphi 0, %s120
      %s124 = sphi 0, %s123
      %s140 = sphi 0, %s124
      %s144 = sphi 0, %s144
      %s146 = sphi 0, %s144
      %s147 = sphi 0, %s146
      %s161 = sphi 0, %s147
      %s167 = sphi 0, %s169
      %s170 = sphi 0, %s167
      %s171 = sphi 0, %s170
      %s187 = sphi 0, %s171
    $region4: #{tpu_custom_call.1} parent=1 // loop_header_branch
      %23 = sbr.rel (%p21) target = $region8
    $region5: #{tpu_custom_call.1} parent=1 // loop_body
      %s25 = ssub.s32 %s20, 1
      %s26 = ssub.s32 %s20, 2
      %s33 = sadd.s32 1, %s28
      %p34 = scmp.ge.s32.totalorder %s33, 2
      %s35 = scalar_select %p34, 0, %s33
      %s36 = sadd.s32 1, %s27
      %s37 = scalar_select %p34, %s36, %s27
      %p38 = scmp.ge.s32.totalorder %s37, 2
      %s39 = scalar_select %p38, 0, %s37
      %s40 = ssub.s32 %s27, %s39
      %p41 = scmp.eq.s32.totalorder %s40, 0
      %s43 = sadd.s32 %s42, 1
      %s44 = scalar_select %p41, %s42, %s43
      %p47 = pneg %p41
      %p48 = scmp.eq.s32.totalorder %s20, 3
      %p49 = por %p47, %p48
      %p50 = scmp.ne.s32.totalorder %s42, %s45
      %p51 = scmp.eq.s32.totalorder %s20, 0
      %p52 = por %p50, %p51
      %p53 = scmp.ne.s32.totalorder %s42, %s45
      %p54 = scmp.eq.s32.totalorder %s25, 3
      %p55 = por %p53, %p54
      %p56 = scmp.ne.s32.totalorder %s45, %s46
      %p57 = scmp.eq.s32.totalorder %s25, 0
      %p58 = por %p56, %p57
      %p59 = scmp.ne.s32.totalorder %s45, %s46
      %p60 = scmp.eq.s32.totalorder %s26, 3
      %p61 = por %p59, %p60
      %p63 = scmp.ne.s32.totalorder %s46, %s62
      %p64 = scmp.eq.s32.totalorder %s26, 0
      %p65 = por %p63, %p64
      %s66 = ssub.s32 %s28, %s35
      %p67 = scmp.eq.s32.totalorder %s66, 0
      %s69 = sadd.s32 %s68, 1
      %s70 = scalar_select %p67, %s68, %s69
      %p73 = pneg %p67
      %p74 = scmp.eq.s32.totalorder %s20, 3
      %p75 = por %p73, %p74
      %p76 = scmp.ne.s32.totalorder %s68, %s71
      %p77 = scmp.eq.s32.totalorder %s20, 0
      %p78 = por %p76, %p77
      %p79 = scmp.ne.s32.totalorder %s68, %s71
      %p80 = scmp.eq.s32.totalorder %s25, 3
      %p81 = por %p79, %p80
      %p82 = scmp.ne.s32.totalorder %s71, %s72
      %p83 = scmp.eq.s32.totalorder %s25, 0
      %p84 = por %p82, %p83
      %p85 = scmp.ne.s32.totalorder %s71, %s72
      %p86 = scmp.eq.s32.totalorder %s26, 3
      %p87 = por %p85, %p86
      %p89 = scmp.ne.s32.totalorder %s72, %s88
      %p90 = scmp.eq.s32.totalorder %s26, 0
      %p91 = por %p89, %p90
      %s92 = ssub.s32 %s28, %s35
      %p93 = scmp.eq.s32.totalorder %s92, 0
      %s95 = sadd.s32 %s94, 1
      %s96 = scalar_select %p93, %s94, %s95
      %p99 = pneg %p93
      %p100 = scmp.eq.s32.totalorder %s20, 3
      %p101 = por %p99, %p100
      %p102 = scmp.ne.s32.totalorder %s94, %s97
      %p103 = scmp.eq.s32.totalorder %s20, 0
      %p104 = por %p102, %p103
      %p105 = scmp.ne.s32.totalorder %s94, %s97
      %p106 = scmp.eq.s32.totalorder %s25, 3
      %p107 = por %p105, %p106
      %p108 = scmp.ne.s32.totalorder %s97, %s98
      %p109 = scmp.eq.s32.totalorder %s25, 0
      %p110 = por %p108, %p109
      %p111 = scmp.ne.s32.totalorder %s97, %s98
      %p112 = scmp.eq.s32.totalorder %s26, 3
      %p113 = por %p111, %p112
      %p115 = scmp.ne.s32.totalorder %s98, %s114
      %p116 = scmp.eq.s32.totalorder %s26, 0
      %p117 = por %p115, %p116
      %s118 = ssub.s32 %s28, %s35
      %p119 = scmp.eq.s32.totalorder %s118, 0
      %s121 = sadd.s32 %s120, 1
      %s122 = scalar_select %p119, %s120, %s121
      %p125 = pneg %p119
      %p126 = scmp.eq.s32.totalorder %s20, 3
      %p127 = por %p125, %p126
      %p128 = scmp.ne.s32.totalorder %s120, %s123
      %p129 = scmp.eq.s32.totalorder %s20, 0
      %p130 = por %p128, %p129
      %p131 = scmp.ne.s32.totalorder %s120, %s123
      %p132 = scmp.eq.s32.totalorder %s25, 3
      %p133 = por %p131, %p132
      %p134 = scmp.ne.s32.totalorder %s123, %s124
      %p135 = scmp.eq.s32.totalorder %s25, 0
      %p136 = por %p134, %p135
      %p137 = scmp.ne.s32.totalorder %s123, %s124
      %p138 = scmp.eq.s32.totalorder %s26, 3
      %p139 = por %p137, %p138
      %p141 = scmp.ne.s32.totalorder %s124, %s140
      %p142 = scmp.eq.s32.totalorder %s26, 0
      %p143 = por %p141, %p142
      %s145 = sadd.s32 %s144, 1
      %p148 = scmp.eq.s32.totalorder %s20, 3
      %p149 = scmp.ne.s32.totalorder %s144, %s146
      %p150 = scmp.eq.s32.totalorder %s20, 0
      %p151 = por %p149, %p150
      %p152 = scmp.ne.s32.totalorder %s144, %s146
      %p153 = scmp.eq.s32.totalorder %s25, 3
      %p154 = por %p152, %p153
      %p155 = scmp.ne.s32.totalorder %s146, %s147
      %p156 = scmp.eq.s32.totalorder %s25, 0
      %p157 = por %p155, %p156
      %p158 = scmp.ne.s32.totalorder %s146, %s147
      %p159 = scmp.eq.s32.totalorder %s26, 3
      %p160 = por %p158, %p159
      %p162 = scmp.ne.s32.totalorder %s147, %s161
      %p163 = scmp.eq.s32.totalorder %s26, 0
      %p164 = por %p162, %p163
      %s165 = ssub.s32 %s27, %s39
      %p166 = scmp.eq.s32.totalorder %s165, 0
      %s168 = sadd.s32 %s167, 1
      %s169 = scalar_select %p166, %s167, %s168
      %p172 = pneg %p166
      %p173 = scmp.eq.s32.totalorder %s20, 3
      %p174 = por %p172, %p173
      %p175 = scmp.ne.s32.totalorder %s167, %s170
      %p176 = scmp.eq.s32.totalorder %s20, 0
      %p177 = por %p175, %p176
      %p178 = scmp.ne.s32.totalorder %s167, %s170
      %p179 = scmp.eq.s32.totalorder %s25, 3
      %p180 = por %p178, %p179
      %p181 = scmp.ne.s32.totalorder %s170, %s171
      %p182 = scmp.eq.s32.totalorder %s25, 0
      %p183 = por %p181, %p182
      %p184 = scmp.ne.s32.totalorder %s170, %s171
      %p185 = scmp.eq.s32.totalorder %s26, 3
      %p186 = por %p184, %p185
      %p188 = scmp.ne.s32.totalorder %s171, %s187
      %p189 = scmp.eq.s32.totalorder %s26, 0
      %p190 = por %p188, %p189
      %p191 = scmp.le.s32.totalorder 1, %s20
      %p192 = scmp.lt.s32.totalorder %s20, 5
      %p193 = pnand %p191, %p192
      %p194 = pneg %p193
      // Predicated region
      $region9: #{tpu_custom_call.1} parent=5 // pred_check
        _
      $region10: #{tpu_custom_call.1} parent=5 // pred_check_branch
        %196 = sbr.rel (%p193) target = $region12
      $region11: #{tpu_custom_call.1} parent=5 // pred_region
        %s197 = ssub.s32 %s20, 1
        // Predicated region
        $region13: #{tpu_custom_call.1} parent=11 // pred_check
          %p198 = pneg %p157
        $region14: #{tpu_custom_call.1} parent=11 // pred_check_branch
          %200 = sbr.rel (%p198) target = $region16
        $region15: #{tpu_custom_call.1} parent=11 // pred_region
          _
        $region16: #{tpu_custom_call.1} parent=11 // pred_fallthru
          _
      $region12: #{tpu_custom_call.1} parent=5 // pred_fallthru
        _
      %p201 = scmp.lt.s32.totalorder %s20, 4
      // Predicated region
      $region17: #{tpu_custom_call.1} parent=5 // pred_check
        %p202 = pneg %p201
      $region18: #{tpu_custom_call.1} parent=5 // pred_check_branch
        %204 = sbr.rel (%p202) target = $region20
      $region19: #{tpu_custom_call.1} parent=5 // pred_region
        // Predicated region
        $region21: #{tpu_custom_call.1} parent=19 // pred_check
          %p205 = pneg %p52
        $region22: #{tpu_custom_call.1} parent=19 // pred_check_branch
          %207 = sbr.rel (%p205) target = $region24
        $region23: #{tpu_custom_call.1} parent=19 // pred_region
          %s208 = sand.u32 %s42, 1
          %s209 = scalar_lea.sflag [#allocation4], %s208
          %s210 = sand.u32 %s42, 1
          %s211 = smul.addr %s210, 64
          %s212 = scalar_lea.vmem [#allocation3], %s211
          %s214 = ssub.s32 1024, 1024
          %215 = vsyncadd %s209, %s214
          %s216 = smul.addr %s27, 16
          %s217 = smul.addr %s216, 64
          %s218 = scalar_lea.hbm %s0, %s217
          %s219 = sshll.u32 %s212, 4
          %s220 = int_to_ptr.vmem [resolvable:$true] %s219
          %225 = dma.hbm_to_vmem [thread:$0]  %s218, 1024, %s220, %s209, 64, 64, 4
        $region24: #{tpu_custom_call.1} parent=19 // pred_fallthru
          _
        // Predicated region
        $region25: #{tpu_custom_call.1} parent=19 // pred_check
          %p226 = pneg %p78
        $region26: #{tpu_custom_call.1} parent=19 // pred_check_branch
          %228 = sbr.rel (%p226) target = $region28
        $region27: #{tpu_custom_call.1} parent=19 // pred_region
          %s229 = sand.u32 %s20, 1
          %s230 = scalar_lea.sflag [#allocation7], %s229
          %s231 = sand.u32 %s68, 1
          %s232 = smul.addr %s231, 64
          %s233 = scalar_lea.vmem [#allocation6], %s232
          %s235 = ssub.s32 1024, 1024
          %236 = vsyncadd %s230, %s235
          %s237 = smul.addr %s28, 64
          %s238 = scalar_lea.hbm %s1, %s237
          %s239 = sshll.u32 %s233, 4
          %s240 = int_to_ptr.vmem [resolvable:$true] %s239
          %245 = dma.hbm_to_vmem [thread:$0]  %s238, 1024, %s240, %s230, 128, 64, 4
        $region28: #{tpu_custom_call.1} parent=19 // pred_fallthru
          _
        // Predicated region
        $region29: #{tpu_custom_call.1} parent=19 // pred_check
          %p246 = pneg %p104
        $region30: #{tpu_custom_call.1} parent=19 // pred_check_branch
          %248 = sbr.rel (%p246) target = $region32
        $region31: #{tpu_custom_call.1} parent=19 // pred_region
          %p249 = scmp.lt.s32.totalorder %s28, 1
          %s250 = scalar_select %p249, %s28, 1
          %s251 = smul.addr %s250, 2
          %s252 = scalar_lea.vmem %s2, %s251
        $region32: #{tpu_custom_call.1} parent=19 // pred_fallthru
          _
        // Predicated region
        $region33: #{tpu_custom_call.1} parent=19 // pred_check
          %p253 = pneg %p130
        $region34: #{tpu_custom_call.1} parent=19 // pred_check_branch
          %255 = sbr.rel (%p253) target = $region36
        $region35: #{tpu_custom_call.1} parent=19 // pred_region
          %s256 = sand.u32 %s20, 1
          %s257 = scalar_lea.sflag [#allocation7], %s256
          %s258 = sand.u32 %s120, 1
          %s259 = smul.addr %s258, 64
          %s260 = scalar_lea.vmem [#allocation8], %s259
          %s261 = smul.u32 16, %s28
          %s263 = ssub.s32 1024, 1024
          %264 = vsyncadd %s257, %s263
          %s265 = smul.addr %s261, 64
          %s266 = scalar_lea.hbm %s3, %s265
          %s267 = sshll.u32 %s260, 4
          %s268 = int_to_ptr.vmem [resolvable:$true] %s267
          %273 = dma.hbm_to_vmem [thread:$0]  %s266, 1024, %s268, %s257, 64, 64, 4
        $region36: #{tpu_custom_call.1} parent=19 // pred_fallthru
          _
      $region20: #{tpu_custom_call.1} parent=5 // pred_fallthru
        _
      %p274 = scmp.le.s32.totalorder 1, %s20
      %p275 = scmp.lt.s32.totalorder %s20, 5
      %p276 = pnand %p274, %p275
      %p277 = pneg %p276
      // Predicated region
      $region37: #{tpu_custom_call.1} parent=5 // pred_check
        _
      $region38: #{tpu_custom_call.1} parent=5 // pred_check_branch
        %279 = sbr.rel (%p276) target = $region40
      $region39: #{tpu_custom_call.1} parent=5 // pred_region
        %s280 = ssub.s32 %s20, 1
        %s281 = sand.u32 %s45, 1
        %s282 = scalar_lea.sflag [#allocation4], %s281
        %s283 = sand.u32 %s45, 1
        %s284 = smul.addr %s283, 64
        %s285 = scalar_lea.vmem [#allocation3], %s284
        // Predicated region
        $region41: #{tpu_custom_call.1} parent=39 // pred_check
          %p286 = pneg %p58
        $region42: #{tpu_custom_call.1} parent=39 // pred_check_branch
          %288 = sbr.rel (%p286) target = $region44
        $region43: #{tpu_custom_call.1} parent=39 // pred_region
          %289 = dma.done %s282, 1024
        $region44: #{tpu_custom_call.1} parent=39 // pred_fallthru
          _
        %s290 = sand.u32 %s25, 1
        %s291 = scalar_lea.sflag [#allocation7], %s290
        %s292 = sand.u32 %s71, 1
        %s293 = smul.addr %s292, 64
        %s294 = scalar_lea.vmem [#allocation6], %s293
        // Predicated region
        $region45: #{tpu_custom_call.1} parent=39 // pred_check
          %p295 = pneg %p84
        $region46: #{tpu_custom_call.1} parent=39 // pred_check_branch
          %297 = sbr.rel (%p295) target = $region48
        $region47: #{tpu_custom_call.1} parent=39 // pred_region
          %298 = dma.done %s291, 1024
        $region48: #{tpu_custom_call.1} parent=39 // pred_fallthru
          _
        %s299 = sand.u32 %s25, 1
        %s300 = scalar_lea.sflag [#allocation7], %s299
        %s301 = sand.u32 %s123, 1
        %s302 = smul.addr %s301, 64
        %s303 = scalar_lea.vmem [#allocation8], %s302
        // Predicated region
        $region49: #{tpu_custom_call.1} parent=39 // pred_check
          %p304 = pneg %p136
        $region50: #{tpu_custom_call.1} parent=39 // pred_check_branch
          %306 = sbr.rel (%p304) target = $region52
        $region51: #{tpu_custom_call.1} parent=39 // pred_region
          %307 = dma.done %s300, 1024
        $region52: #{tpu_custom_call.1} parent=39 // pred_fallthru
          _
        %s308 = sand.u32 %s45, 1
        %s309 = scalar_lea.sflag [#allocation4], %s308
        %s310 = sand.u32 %s45, 1
        %s311 = smul.addr %s310, 64
        %s312 = scalar_lea.vmem [#allocation3], %s311
        %p313 = pneg %p58
        %p314 = pneg %p55
        %s315 = sand.u32 %s25, 1
        %s316 = scalar_lea.sflag [#allocation7], %s315
        %s317 = sand.u32 %s71, 1
        %s318 = smul.addr %s317, 64
        %s319 = scalar_lea.vmem [#allocation6], %s318
        %p320 = pneg %p84
        %p321 = pneg %p81
        %p322 = scmp.lt.s32.totalorder %s30, 1
        %s323 = scalar_select %p322, %s30, 1
        %s324 = smul.addr %s323, 2
        %s325 = scalar_lea.vmem %s2, %s324
        %p326 = pneg %p110
        %p327 = pneg %p107
        %s328 = sand.u32 %s25, 1
        %s329 = scalar_lea.sflag [#allocation7], %s328
        %s330 = sand.u32 %s123, 1
        %s331 = smul.addr %s330, 64
        %s332 = scalar_lea.vmem [#allocation8], %s331
        %p333 = pneg %p136
        %p334 = pneg %p133
        %p335 = pneg %p157
        %p336 = pneg %p154
        %p337 = pneg %p183
        %p338 = pneg %p180
        %s339 = sand.u32 %s170, 1
        %s340 = scalar_lea.sflag [#allocation5], %s339
        %s341 = sand.u32 %s170, 1
        %s342 = smul.addr %s341, 128
        %s343 = scalar_lea.vmem [#allocation9], %s342
        %p344 = scmp.lt.s32.totalorder %s30, 1
        %s345 = scalar_select %p344, %s30, 1
        %s346 = smul.addr %s345, 2
        %s347 = scalar_lea.vmem %s2, %s346
        %s348 = smul.u32 16, %s30
        %p350 = scmp.eq.s32.totalorder %s30, 0
        // Predicated region
        $region53: #{tpu_custom_call.1} parent=39 // pred_check
          %p351 = pneg %p350
        $region54: #{tpu_custom_call.1} parent=39 // pred_check_branch
          %353 = sbr.rel (%p351) target = $region56
        $region55: #{tpu_custom_call.1} parent=39 // pred_region
          %354 = vst [vmem:[#allocation2] sm:$0xff] 0.0
          %355 = vst [vmem:[#allocation2 + $0x8] sm:$0xff] 0.0
          %356 = vst [vmem:[#allocation2 + $0x10] sm:$0xff] 0.0
          %357 = vst [vmem:[#allocation2 + $0x18] sm:$0xff] 0.0
          %358 = vst [vmem:[#allocation2 + $0x20] sm:$0xff] 0.0
          %359 = vst [vmem:[#allocation2 + $0x28] sm:$0xff] 0.0
          %360 = vst [vmem:[#allocation2 + $0x30] sm:$0xff] 0.0
          %361 = vst [vmem:[#allocation2 + $0x38] sm:$0xff] 0.0
          %362 = vst [vmem:[#allocation2 + $0x40] sm:$0xff] 0.0
          %363 = vst [vmem:[#allocation2 + $0x48] sm:$0xff] 0.0
          %364 = vst [vmem:[#allocation2 + $0x50] sm:$0xff] 0.0
          %365 = vst [vmem:[#allocation2 + $0x58] sm:$0xff] 0.0
          %366 = vst [vmem:[#allocation2 + $0x60] sm:$0xff] 0.0
          %367 = vst [vmem:[#allocation2 + $0x68] sm:$0xff] 0.0
          %368 = vst [vmem:[#allocation2 + $0x70] sm:$0xff] 0.0
          %369 = vst [vmem:[#allocation2 + $0x78] sm:$0xff] 0.0
        $region56: #{tpu_custom_call.1} parent=39 // pred_fallthru
          _
        %v370 = vld [vmem:[%s285] sm:$0xf]
        %v371 = vld [vmem:[%s285 + $0x4] sm:$0xf]
        %v372 = vld [vmem:[%s285 + $0x8] sm:$0xf]
        %v373 = vld [vmem:[%s285 + $0xc] sm:$0xf]
        %v374 = vld [vmem:[%s285 + $0x10] sm:$0xf]
        %v375 = vld [vmem:[%s285 + $0x14] sm:$0xf]
        %v376 = vld [vmem:[%s285 + $0x18] sm:$0xf]
        %v377 = vld [vmem:[%s285 + $0x1c] sm:$0xf]
        %v378 = vld [vmem:[%s285 + $0x20] sm:$0xf]
        %v379 = vld [vmem:[%s285 + $0x24] sm:$0xf]
        %v380 = vld [vmem:[%s285 + $0x28] sm:$0xf]
        %v381 = vld [vmem:[%s285 + $0x2c] sm:$0xf]
        %v382 = vld [vmem:[%s285 + $0x30] sm:$0xf]
        %v383 = vld [vmem:[%s285 + $0x34] sm:$0xf]
        %v384 = vld [vmem:[%s285 + $0x38] sm:$0xf]
        %v385 = vld [vmem:[%s285 + $0x3c] sm:$0xf]
        %v386 = vld [vmem:[%s294] sm:$0xf]
        %v387 = vld [vmem:[%s294 + $0x4] sm:$0xf]
        %v388 = vld [vmem:[%s294 + $0x8] sm:$0xf]
        %v389 = vld [vmem:[%s294 + $0xc] sm:$0xf]
        %v390 = vld [vmem:[%s294 + $0x10] sm:$0xf]
        %v391 = vld [vmem:[%s294 + $0x14] sm:$0xf]
        %v392 = vld [vmem:[%s294 + $0x18] sm:$0xf]
        %v393 = vld [vmem:[%s294 + $0x1c] sm:$0xf]
        %v394 = vld [vmem:[%s294 + $0x20] sm:$0xf]
        %v395 = vld [vmem:[%s294 + $0x24] sm:$0xf]
        %v396 = vld [vmem:[%s294 + $0x28] sm:$0xf]
        %v397 = vld [vmem:[%s294 + $0x2c] sm:$0xf]
        %v398 = vld [vmem:[%s294 + $0x30] sm:$0xf]
        %v399 = vld [vmem:[%s294 + $0x34] sm:$0xf]
        %v400 = vld [vmem:[%s294 + $0x38] sm:$0xf]
        %v401 = vld [vmem:[%s294 + $0x3c] sm:$0xf]
        %v418 = vunpack.c.l.b16 %v370
        %v419 = vunpack.c.l.b16 %v371
        %v420 = vunpack.c.l.b16 %v372
        %v421 = vunpack.c.l.b16 %v373
        %v422 = vunpack.c.l.b16 %v374
        %v423 = vunpack.c.l.b16 %v375
        %v424 = vunpack.c.l.b16 %v376
        %v425 = vunpack.c.l.b16 %v377
        %v426 = vunpack.c.l.b16 %v378
        %v427 = vunpack.c.l.b16 %v379
        %v428 = vunpack.c.l.b16 %v380
        %v429 = vunpack.c.l.b16 %v381
        %v430 = vunpack.c.l.b16 %v382
        %v431 = vunpack.c.l.b16 %v383
        %v432 = vunpack.c.l.b16 %v384
        %v433 = vunpack.c.l.b16 %v385
        %v434 = vpack.c.b16 %v419, %v418
        %v435 = vpack.c.b16 %v421, %v420
        %v436 = vpack.c.b16 %v423, %v422
        %v437 = vpack.c.b16 %v425, %v424
        %v438 = vpack.c.b16 %v427, %v426
        %v439 = vpack.c.b16 %v429, %v428
        %v440 = vpack.c.b16 %v431, %v430
        %v441 = vpack.c.b16 %v433, %v432
        %v466 = vunpack.c.l.b16 %v386
        %v467 = vunpack.c.l.b16 %v387
        %v468 = vunpack.c.l.b16 %v388
        %v469 = vunpack.c.l.b16 %v389
        %v470 = vunpack.c.l.b16 %v390
        %v471 = vunpack.c.l.b16 %v391
        %v472 = vunpack.c.l.b16 %v392
        %v473 = vunpack.c.l.b16 %v393
        %v474 = vunpack.c.l.b16 %v394
        %v475 = vunpack.c.l.b16 %v395
        %v476 = vunpack.c.l.b16 %v396
        %v477 = vunpack.c.l.b16 %v397
        %v478 = vunpack.c.l.b16 %v398
        %v479 = vunpack.c.l.b16 %v399
        %v480 = vunpack.c.l.b16 %v400
        %v481 = vunpack.c.l.b16 %v401
        %v482 = vpack.c.b16 %v467, %v466
        %v483 = vpack.c.b16 %v469, %v468
        %v484 = vpack.c.b16 %v471, %v470
        %v485 = vpack.c.b16 %v473, %v472
        %v486 = vpack.c.b16 %v475, %v474
        %v487 = vpack.c.b16 %v477, %v476
        %v488 = vpack.c.b16 %v479, %v478
        %v489 = vpack.c.b16 %v481, %v480
        %498 = vmatprep.subr.bf16.mxu0 0
        %499 = vmatpush1.bf16.msra.mxu0 %v482
        %500 = vmatprep.subr.bf16.mxu0 0
        %501 = vmatpush1.bf16.msra.mxu0 %v483
        %502 = vmatprep.subr.bf16.mxu0 0
        %503 = vmatpush1.bf16.msra.mxu0 %v484
        %504 = vmatprep.subr.bf16.mxu0 0
        %505 = vmatpush1.bf16.msra.mxu0 %v485
        %506 = vmatprep.subr.bf16.mxu0 0
        %507 = vmatpush1.bf16.msra.mxu0 %v486
        %508 = vmatprep.subr.bf16.mxu0 0
        %509 = vmatpush1.bf16.msra.mxu0 %v487
        %510 = vmatprep.subr.bf16.mxu0 0
        %511 = vmatpush1.bf16.msra.mxu0 %v488
        %512 = vmatprep.subr.bf16.mxu0 0
        %513 = vmatpush1.bf16.msra.mxu0 %v489
        %514 = vmatprep.subr.bf16.mxu0 0
        %515 = vmatpush1.bf16.msra.mxu0 0
        %516 = vmatprep.subr.bf16.mxu0 0
        %517 = vmatpush1.bf16.msra.mxu0 0
        %518 = vmatprep.subr.bf16.mxu0 0
        %519 = vmatpush1.bf16.msra.mxu0 0
        %520 = vmatprep.subr.bf16.mxu0 0
        %521 = vmatpush1.bf16.msra.mxu0 0
        %522 = vmatprep.subr.bf16.mxu0 0
        %523 = vmatpush1.bf16.msra.mxu0 0
        %524 = vmatprep.subr.bf16.mxu0 0
        %525 = vmatpush1.bf16.msra.mxu0 0
        %526 = vmatprep.subr.bf16.mxu0 0
        %527 = vmatpush1.bf16.msra.mxu0 0
        %528 = vmatprep.subr.bf16.mxu0 0
        %529 = vmatpush1.bf16.msra.mxu0 0
        %530 = vmatprep.mubr.bf16.mxu0 0
        %531 = vmatmul.mubr.bf16.gmra.mrb[0].mxu0 %v434
        %v532 = vpop.f32.mrb[0].mxu0
        %v533 = vadd.f32 0.0, %v532
        %v534 = vpop.f32.mrb[0].mxu0
        %v535 = vpop.f32.mrb[0].mxu0
        %v536 = vadd.f32 0.0, %v535
        %v537 = vpop.f32.mrb[0].mxu0
        %538 = vmatprep.mubr.bf16.mxu0 0
        %539 = vmatmul.mubr.bf16.gmra.mrb[0].mxu0 %v435
        %v540 = vpop.f32.mrb[0].mxu0
        %v541 = vadd.f32 0.0, %v540
        %v542 = vpop.f32.mrb[0].mxu0
        %v543 = vpop.f32.mrb[0].mxu0
        %v544 = vadd.f32 0.0, %v543
        %v545 = vpop.f32.mrb[0].mxu0
        %546 = vmatprep.mubr.bf16.mxu0 0
        %547 = vmatmul.mubr.bf16.gmra.mrb[0].mxu0 %v436
        %v548 = vpop.f32.mrb[0].mxu0
        %v549 = vadd.f32 0.0, %v548
        %v550 = vpop.f32.mrb[0].mxu0
        %v551 = vpop.f32.mrb[0].mxu0
        %v552 = vadd.f32 0.0, %v551
        %v553 = vpop.f32.mrb[0].mxu0
        %554 = vmatprep.mubr.bf16.mxu0 0
        %555 = vmatmul.mubr.bf16.gmra.mrb[0].mxu0 %v437
        %v556 = vpop.f32.mrb[0].mxu0
        %v557 = vadd.f32 0.0, %v556
        %v558 = vpop.f32.mrb[0].mxu0
        %v559 = vpop.f32.mrb[0].mxu0
        %v560 = vadd.f32 0.0, %v559
        %v561 = vpop.f32.mrb[0].mxu0
        %562 = vmatprep.mubr.bf16.mxu0 0
        %563 = vmatmul.mubr.bf16.gmra.mrb[0].mxu0 %v438
        %v564 = vpop.f32.mrb[0].mxu0
        %v565 = vadd.f32 0.0, %v564
        %v566 = vpop.f32.mrb[0].mxu0
        %v567 = vpop.f32.mrb[0].mxu0
        %v568 = vadd.f32 0.0, %v567
        %v569 = vpop.f32.mrb[0].mxu0
        %570 = vmatprep.mubr.bf16.mxu0 0
        %571 = vmatmul.mubr.bf16.gmra.mrb[0].mxu0 %v439
        %v572 = vpop.f32.mrb[0].mxu0
        %v573 = vadd.f32 0.0, %v572
        %v574 = vpop.f32.mrb[0].mxu0
        %v575 = vpop.f32.mrb[0].mxu0
        %v576 = vadd.f32 0.0, %v575
        %v577 = vpop.f32.mrb[0].mxu0
        %578 = vmatprep.mubr.bf16.mxu0 0
        %579 = vmatmul.mubr.bf16.gmra.mrb[0].mxu0 %v440
        %v580 = vpop.f32.mrb[0].mxu0
        %v581 = vadd.f32 0.0, %v580
        %v582 = vpop.f32.mrb[0].mxu0
        %v583 = vpop.f32.mrb[0].mxu0
        %v584 = vadd.f32 0.0, %v583
        %v585 = vpop.f32.mrb[0].mxu0
        %586 = vmatprep.mubr.bf16.mxu0 0
        %587 = vmatmul.mubr.bf16.gmra.mrb[0].mxu0 %v441
        %v588 = vpop.f32.mrb[0].mxu0
        %v589 = vadd.f32 0.0, %v588
        %v590 = vpop.f32.mrb[0].mxu0
        %v591 = vpop.f32.mrb[0].mxu0
        %v592 = vadd.f32 0.0, %v591
        %v593 = vpop.f32.mrb[0].mxu0
        %594 = vdwg.mxu0
        %v595 = vadd.f32 %v533, %v536
        %v596 = vadd.f32 %v595, %v541
        %v597 = vadd.f32 %v596, %v544
        %v598 = vadd.f32 %v597, %v549
        %v599 = vadd.f32 %v598, %v552
        %v600 = vadd.f32 %v599, %v557
        %v601 = vadd.f32 %v600, %v560
        %v602 = vadd.f32 %v601, %v565
        %v603 = vadd.f32 %v602, %v568
        %v604 = vadd.f32 %v603, %v573
        %v605 = vadd.f32 %v604, %v576
        %v606 = vadd.f32 %v605, %v581
        %v607 = vadd.f32 %v606, %v584
        %v608 = vadd.f32 %v607, %v589
        %v609 = vadd.f32 %v608, %v592
        %v610 = vrot.slane %v609, 4
        %v611 = vadd.f32 %v609, %v610
        %v612 = vrot.slane %v611, 2
        %v613 = vadd.f32 %v611, %v612
        %v614 = vrot.slane %v613, 1
        %v615 = vadd.f32 %v613, %v614
        %v616 = vmul.f32 %v615, 0.0078125
        %v617 = vmul.f32 %v533, %v533
        %v618 = vmul.f32 %v536, %v536
        %v619 = vmul.f32 %v541, %v541
        %v620 = vmul.f32 %v544, %v544
        %v621 = vmul.f32 %v549, %v549
        %v622 = vmul.f32 %v552, %v552
        %v623 = vmul.f32 %v557, %v557
        %v624 = vmul.f32 %v560, %v560
        %v625 = vmul.f32 %v565, %v565
        %v626 = vmul.f32 %v568, %v568
        %v627 = vmul.f32 %v573, %v573
        %v628 = vmul.f32 %v576, %v576
        %v629 = vmul.f32 %v581, %v581
        %v630 = vmul.f32 %v584, %v584
        %v631 = vmul.f32 %v589, %v589
        %v632 = vmul.f32 %v592, %v592
        %v633 = vadd.f32 %v617, %v618
        %v634 = vadd.f32 %v633, %v619
        %v635 = vadd.f32 %v634, %v620
        %v636 = vadd.f32 %v635, %v621
        %v637 = vadd.f32 %v636, %v622
        %v638 = vadd.f32 %v637, %v623
        %v639 = vadd.f32 %v638, %v624
        %v640 = vadd.f32 %v639, %v625
        %v641 = vadd.f32 %v640, %v626
        %v642 = vadd.f32 %v641, %v627
        %v643 = vadd.f32 %v642, %v628
        %v644 = vadd.f32 %v643, %v629
        %v645 = vadd.f32 %v644, %v630
        %v646 = vadd.f32 %v645, %v631
        %v647 = vadd.f32 %v646, %v632
        %v648 = vrot.slane %v647, 4
        %v649 = vadd.f32 %v647, %v648
        %v650 = vrot.slane %v649, 2
        %v651 = vadd.f32 %v649, %v650
        %v652 = vrot.slane %v651, 1
        %v653 = vadd.f32 %v651, %v652
        %v654 = vmul.f32 %v653, 0.0078125
        %v655 = vmul.f32 %v616, %v616
        %v656 = vsub.f32 %v654, %v655
        %v657 = vmax.f32 %v656, 0.0
        %v658 = vld [vmem:[%s347] sm:$0x1]
        %v659 = vld [vmem:[%s347 + $0x1] sm:$0x1]
        %v660 = vadd.f32 %v657, 1e-05
        %v661 = vrsqrt.pop %v660
        %v662 = vmul.f32 %v658, %v661
        %v663 = vmul.f32 %v616, %v662
        %v664 = vsub.f32 %v659, %v663
        %v665 = vpack.c.bf16 %v536, %v533
        %v666 = vpack.c.bf16 %v544, %v541
        %v667 = vpack.c.bf16 %v552, %v549
        %v668 = vpack.c.bf16 %v560, %v557
        %v669 = vpack.c.bf16 %v568, %v565
        %v670 = vpack.c.bf16 %v576, %v573
        %v671 = vpack.c.bf16 %v584, %v581
        %v672 = vpack.c.bf16 %v592, %v589
        %v673 = vpack.c.bf16 %v662, %v662
        %v675 = vpack.i.b16 %v673, %v673
        %v677 = vlaneseq
        %v678 = vshrl.u32 %v677, 7
        %v679 = vsub.s32 0, %v678
        %v680 = vrot.slane %v675, %v679
        %v681 = vmul.bf16 %v665, %v680
        %v682 = vmul.bf16 %v666, %v680
        %v683 = vmul.bf16 %v667, %v680
        %v684 = vmul.bf16 %v668, %v680
        %v685 = vmul.bf16 %v669, %v680
        %v686 = vmul.bf16 %v670, %v680
        %v687 = vmul.bf16 %v671, %v680
        %v688 = vmul.bf16 %v672, %v680
        %v689 = vpack.c.bf16 %v664, %v664
        %v691 = vpack.i.b16 %v689, %v689
        %v693 = vlaneseq
        %v694 = vshrl.u32 %v693, 7
        %v695 = vsub.s32 0, %v694
        %v696 = vrot.slane %v691, %v695
        %v697 = vadd.bf16 %v681, %v696
        %v698 = vadd.bf16 %v682, %v696
        %v699 = vadd.bf16 %v683, %v696
        %v700 = vadd.bf16 %v684, %v696
        %v701 = vadd.bf16 %v685, %v696
        %v702 = vadd.bf16 %v686, %v696
        %v703 = vadd.bf16 %v687, %v696
        %v704 = vadd.bf16 %v688, %v696
        %v705 = vmax.bf16 %v697, 0
        %v706 = vmax.bf16 %v698, 0
        %v707 = vmax.bf16 %v699, 0
        %v708 = vmax.bf16 %v700, 0
        %v709 = vmax.bf16 %v701, 0
        %v710 = vmax.bf16 %v702, 0
        %v711 = vmax.bf16 %v703, 0
        %v712 = vmax.bf16 %v704, 0
        %v713 = vld [vmem:[#allocation2] sm:$0xff]
        %v714 = vld [vmem:[#allocation2 + $0x8] sm:$0xff]
        %v715 = vld [vmem:[#allocation2 + $0x10] sm:$0xff]
        %v716 = vld [vmem:[#allocation2 + $0x18] sm:$0xff]
        %v717 = vld [vmem:[#allocation2 + $0x20] sm:$0xff]
        %v718 = vld [vmem:[#allocation2 + $0x28] sm:$0xff]
        %v719 = vld [vmem:[#allocation2 + $0x30] sm:$0xff]
        %v720 = vld [vmem:[#allocation2 + $0x38] sm:$0xff]
        %v721 = vld [vmem:[#allocation2 + $0x40] sm:$0xff]
        %v722 = vld [vmem:[#allocation2 + $0x48] sm:$0xff]
        %v723 = vld [vmem:[#allocation2 + $0x50] sm:$0xff]
        %v724 = vld [vmem:[#allocation2 + $0x58] sm:$0xff]
        %v725 = vld [vmem:[#allocation2 + $0x60] sm:$0xff]
        %v726 = vld [vmem:[#allocation2 + $0x68] sm:$0xff]
        %v727 = vld [vmem:[#allocation2 + $0x70] sm:$0xff]
        %v728 = vld [vmem:[#allocation2 + $0x78] sm:$0xff]
        %v729 = vld [vmem:[%s303] sm:$0xf]
        %v730 = vld [vmem:[%s303 + $0x4] sm:$0xf]
        %v731 = vld [vmem:[%s303 + $0x8] sm:$0xf]
        %v732 = vld [vmem:[%s303 + $0xc] sm:$0xf]
        %v733 = vld [vmem:[%s303 + $0x10] sm:$0xf]
        %v734 = vld [vmem:[%s303 + $0x14] sm:$0xf]
        %v735 = vld [vmem:[%s303 + $0x18] sm:$0xf]
        %v736 = vld [vmem:[%s303 + $0x1c] sm:$0xf]
        %v737 = vld [vmem:[%s303 + $0x20] sm:$0xf]
        %v738 = vld [vmem:[%s303 + $0x24] sm:$0xf]
        %v739 = vld [vmem:[%s303 + $0x28] sm:$0xf]
        %v740 = vld [vmem:[%s303 + $0x2c] sm:$0xf]
        %v741 = vld [vmem:[%s303 + $0x30] sm:$0xf]
        %v742 = vld [vmem:[%s303 + $0x34] sm:$0xf]
        %v743 = vld [vmem:[%s303 + $0x38] sm:$0xf]
        %v744 = vld [vmem:[%s303 + $0x3c] sm:$0xf]
        %v761 = vunpack.c.l.b16 %v729
        %v762 = vunpack.c.l.b16 %v730
        %v763 = vunpack.c.l.b16 %v731
        %v764 = vunpack.c.l.b16 %v732
        %v765 = vunpack.c.l.b16 %v733
        %v766 = vunpack.c.l.b16 %v734
        %v767 = vunpack.c.l.b16 %v735
        %v768 = vunpack.c.l.b16 %v736
        %v769 = vunpack.c.l.b16 %v737
        %v770 = vunpack.c.l.b16 %v738
        %v771 = vunpack.c.l.b16 %v739
        %v772 = vunpack.c.l.b16 %v740
        %v773 = vunpack.c.l.b16 %v741
        %v774 = vunpack.c.l.b16 %v742
        %v775 = vunpack.c.l.b16 %v743
        %v776 = vunpack.c.l.b16 %v744
        %v777 = vpack.c.b16 %v762, %v761
        %v778 = vpack.c.b16 %v764, %v763
        %v779 = vpack.c.b16 %v766, %v765
        %v780 = vpack.c.b16 %v768, %v767
        %v781 = vpack.c.b16 %v770, %v769
        %v782 = vpack.c.b16 %v772, %v771
        %v783 = vpack.c.b16 %v774, %v773
        %v784 = vpack.c.b16 %v776, %v775
        %793 = vmatprep.subr.bf16.mxu0 0
        %794 = vmatpush1.bf16.msra.mxu0 %v777
        %795 = vmatprep.subr.bf16.mxu0 0
        %796 = vmatpush1.bf16.msra.mxu0 %v778
        %797 = vmatprep.subr.bf16.mxu0 0
        %798 = vmatpush1.bf16.msra.mxu0 %v779
        %799 = vmatprep.subr.bf16.mxu0 0
        %800 = vmatpush1.bf16.msra.mxu0 %v780
        %801 = vmatprep.subr.bf16.mxu0 0
        %802 = vmatpush1.bf16.msra.mxu0 %v781
        %803 = vmatprep.subr.bf16.mxu0 0
        %804 = vmatpush1.bf16.msra.mxu0 %v782
        %805 = vmatprep.subr.bf16.mxu0 0
        %806 = vmatpush1.bf16.msra.mxu0 %v783
        %807 = vmatprep.subr.bf16.mxu0 0
        %808 = vmatpush1.bf16.msra.mxu0 %v784
        %809 = vmatprep.subr.bf16.mxu0 0
        %810 = vmatpush1.bf16.msra.mxu0 0
        %811 = vmatprep.subr.bf16.mxu0 0
        %812 = vmatpush1.bf16.msra.mxu0 0
        %813 = vmatprep.subr.bf16.mxu0 0
        %814 = vmatpush1.bf16.msra.mxu0 0
        %815 = vmatprep.subr.bf16.mxu0 0
        %816 = vmatpush1.bf16.msra.mxu0 0
        %817 = vmatprep.subr.bf16.mxu0 0
        %818 = vmatpush1.bf16.msra.mxu0 0
        %819 = vmatprep.subr.bf16.mxu0 0
        %820 = vmatpush1.bf16.msra.mxu0 0
        %821 = vmatprep.subr.bf16.mxu0 0
        %822 = vmatpush1.bf16.msra.mxu0 0
        %823 = vmatprep.subr.bf16.mxu0 0
        %824 = vmatpush1.bf16.msra.mxu0 0
        %825 = vmatprep.mubr.bf16.mxu0 0
        %826 = vmatmul.mubr.bf16.gmra.mrb[0].mxu0 %v705
        %v827 = vpop.f32.mrb[0].mxu0
        %v828 = vadd.f32 0.0, %v827
        %v829 = vpop.f32.mrb[0].mxu0
        %v830 = vpop.f32.mrb[0].mxu0
        %v831 = vadd.f32 0.0, %v830
        %v832 = vpop.f32.mrb[0].mxu0
        %833 = vmatprep.mubr.bf16.mxu0 0
        %834 = vmatmul.mubr.bf16.gmra.mrb[0].mxu0 %v706
        %v835 = vpop.f32.mrb[0].mxu0
        %v836 = vadd.f32 0.0, %v835
        %v837 = vpop.f32.mrb[0].mxu0
        %v838 = vpop.f32.mrb[0].mxu0
        %v839 = vadd.f32 0.0, %v838
        %v840 = vpop.f32.mrb[0].mxu0
        %841 = vmatprep.mubr.bf16.mxu0 0
        %842 = vmatmul.mubr.bf16.gmra.mrb[0].mxu0 %v707
        %v843 = vpop.f32.mrb[0].mxu0
        %v844 = vadd.f32 0.0, %v843
        %v845 = vpop.f32.mrb[0].mxu0
        %v846 = vpop.f32.mrb[0].mxu0
        %v847 = vadd.f32 0.0, %v846
        %v848 = vpop.f32.mrb[0].mxu0
        %849 = vmatprep.mubr.bf16.mxu0 0
        %850 = vmatmul.mubr.bf16.gmra.mrb[0].mxu0 %v708
        %v851 = vpop.f32.mrb[0].mxu0
        %v852 = vadd.f32 0.0, %v851
        %v853 = vpop.f32.mrb[0].mxu0
        %v854 = vpop.f32.mrb[0].mxu0
        %v855 = vadd.f32 0.0, %v854
        %v856 = vpop.f32.mrb[0].mxu0
        %857 = vmatprep.mubr.bf16.mxu0 0
        %858 = vmatmul.mubr.bf16.gmra.mrb[0].mxu0 %v709
        %v859 = vpop.f32.mrb[0].mxu0
        %v860 = vadd.f32 0.0, %v859
        %v861 = vpop.f32.mrb[0].mxu0
        %v862 = vpop.f32.mrb[0].mxu0
        %v863 = vadd.f32 0.0, %v862
        %v864 = vpop.f32.mrb[0].mxu0
        %865 = vmatprep.mubr.bf16.mxu0 0
        %866 = vmatmul.mubr.bf16.gmra.mrb[0].mxu0 %v710
        %v867 = vpop.f32.mrb[0].mxu0
        %v868 = vadd.f32 0.0, %v867
        %v869 = vpop.f32.mrb[0].mxu0
        %v870 = vpop.f32.mrb[0].mxu0
        %v871 = vadd.f32 0.0, %v870
        %v872 = vpop.f32.mrb[0].mxu0
        %873 = vmatprep.mubr.bf16.mxu0 0
        %874 = vmatmul.mubr.bf16.gmra.mrb[0].mxu0 %v711
        %v875 = vpop.f32.mrb[0].mxu0
        %v876 = vadd.f32 0.0, %v875
        %v877 = vpop.f32.mrb[0].mxu0
        %v878 = vpop.f32.mrb[0].mxu0
        %v879 = vadd.f32 0.0, %v878
        %v880 = vpop.f32.mrb[0].mxu0
        %881 = vmatprep.mubr.bf16.mxu0 0
        %882 = vmatmul.mubr.bf16.gmra.mrb[0].mxu0 %v712
        %v883 = vpop.f32.mrb[0].mxu0
        %v884 = vadd.f32 0.0, %v883
        %v885 = vpop.f32.mrb[0].mxu0
        %v886 = vpop.f32.mrb[0].mxu0
        %v887 = vadd.f32 0.0, %v886
        %v888 = vpop.f32.mrb[0].mxu0
        %889 = vdwg.mxu0
        %v890 = vadd.f32 %v713, %v828
        %v891 = vadd.f32 %v714, %v831
        %v892 = vadd.f32 %v715, %v836
        %v893 = vadd.f32 %v716, %v839
        %v894 = vadd.f32 %v717, %v844
        %v895 = vadd.f32 %v718, %v847
        %v896 = vadd.f32 %v719, %v852
        %v897 = vadd.f32 %v720, %v855
        %v898 = vadd.f32 %v721, %v860
        %v899 = vadd.f32 %v722, %v863
        %v900 = vadd.f32 %v723, %v868
        %v901 = vadd.f32 %v724, %v871
        %v902 = vadd.f32 %v725, %v876
        %v903 = vadd.f32 %v726, %v879
        %v904 = vadd.f32 %v727, %v884
        %v905 = vadd.f32 %v728, %v887
        %906 = vst [vmem:[#allocation2] sm:$0xff] %v890
        %907 = vst [vmem:[#allocation2 + $0x8] sm:$0xff] %v891
        %908 = vst [vmem:[#allocation2 + $0x10] sm:$0xff] %v892
        %909 = vst [vmem:[#allocation2 + $0x18] sm:$0xff] %v893
        %910 = vst [vmem:[#allocation2 + $0x20] sm:$0xff] %v894
        %911 = vst [vmem:[#allocation2 + $0x28] sm:$0xff] %v895
        %912 = vst [vmem:[#allocation2 + $0x30] sm:$0xff] %v896
        %913 = vst [vmem:[#allocation2 + $0x38] sm:$0xff] %v897
        %914 = vst [vmem:[#allocation2 + $0x40] sm:$0xff] %v898
        %915 = vst [vmem:[#allocation2 + $0x48] sm:$0xff] %v899
        %916 = vst [vmem:[#allocation2 + $0x50] sm:$0xff] %v900
        %917 = vst [vmem:[#allocation2 + $0x58] sm:$0xff] %v901
        %918 = vst [vmem:[#allocation2 + $0x60] sm:$0xff] %v902
        %919 = vst [vmem:[#allocation2 + $0x68] sm:$0xff] %v903
        %920 = vst [vmem:[#allocation2 + $0x70] sm:$0xff] %v904
        %921 = vst [vmem:[#allocation2 + $0x78] sm:$0xff] %v905
        %p922 = scmp.eq.s32.totalorder %s30, 1
        // Predicated region
        $region57: #{tpu_custom_call.1} parent=39 // pred_check
          %p923 = pneg %p922
        $region58: #{tpu_custom_call.1} parent=39 // pred_check_branch
          %925 = sbr.rel (%p923) target = $region60
        $region59: #{tpu_custom_call.1} parent=39 // pred_region
          %v926 = vld [vmem:[#allocation2] sm:$0xff]
          %v927 = vld [vmem:[#allocation2 + $0x8] sm:$0xff]
          %v928 = vld [vmem:[#allocation2 + $0x10] sm:$0xff]
          %v929 = vld [vmem:[#allocation2 + $0x18] sm:$0xff]
          %v930 = vld [vmem:[#allocation2 + $0x20] sm:$0xff]
          %v931 = vld [vmem:[#allocation2 + $0x28] sm:$0xff]
          %v932 = vld [vmem:[#allocation2 + $0x30] sm:$0xff]
          %v933 = vld [vmem:[#allocation2 + $0x38] sm:$0xff]
          %v934 = vld [vmem:[#allocation2 + $0x40] sm:$0xff]
          %v935 = vld [vmem:[#allocation2 + $0x48] sm:$0xff]
          %v936 = vld [vmem:[#allocation2 + $0x50] sm:$0xff]
          %v937 = vld [vmem:[#allocation2 + $0x58] sm:$0xff]
          %v938 = vld [vmem:[#allocation2 + $0x60] sm:$0xff]
          %v939 = vld [vmem:[#allocation2 + $0x68] sm:$0xff]
          %v940 = vld [vmem:[#allocation2 + $0x70] sm:$0xff]
          %v941 = vld [vmem:[#allocation2 + $0x78] sm:$0xff]
          %v942 = vld [vmem:[%s4] sm:$0x1]
          %v944 = vlaneseq
          %v945 = vshrl.u32 %v944, 7
          %v946 = vsub.s32 0, %v945
          %v947 = vrot.slane %v942, %v946
          %v949 = vadd.f32 %v926, %v947
          %v950 = vadd.f32 %v927, %v947
          %v951 = vadd.f32 %v928, %v947
          %v952 = vadd.f32 %v929, %v947
          %v953 = vadd.f32 %v930, %v947
          %v954 = vadd.f32 %v931, %v947
          %v955 = vadd.f32 %v932, %v947
          %v956 = vadd.f32 %v933, %v947
          %v957 = vadd.f32 %v934, %v947
          %v958 = vadd.f32 %v935, %v947
          %v959 = vadd.f32 %v936, %v947
          %v960 = vadd.f32 %v937, %v947
          %v961 = vadd.f32 %v938, %v947
          %v962 = vadd.f32 %v939, %v947
          %v963 = vadd.f32 %v940, %v947
          %v964 = vadd.f32 %v941, %v947
          %965 = vst [vmem:[%s343] sm:$0xff] %v949
          %966 = vst [vmem:[%s343 + $0x8] sm:$0xff] %v950
          %967 = vst [vmem:[%s343 + $0x10] sm:$0xff] %v951
          %968 = vst [vmem:[%s343 + $0x18] sm:$0xff] %v952
          %969 = vst [vmem:[%s343 + $0x20] sm:$0xff] %v953
          %970 = vst [vmem:[%s343 + $0x28] sm:$0xff] %v954
          %971 = vst [vmem:[%s343 + $0x30] sm:$0xff] %v955
          %972 = vst [vmem:[%s343 + $0x38] sm:$0xff] %v956
          %973 = vst [vmem:[%s343 + $0x40] sm:$0xff] %v957
          %974 = vst [vmem:[%s343 + $0x48] sm:$0xff] %v958
          %975 = vst [vmem:[%s343 + $0x50] sm:$0xff] %v959
          %976 = vst [vmem:[%s343 + $0x58] sm:$0xff] %v960
          %977 = vst [vmem:[%s343 + $0x60] sm:$0xff] %v961
          %978 = vst [vmem:[%s343 + $0x68] sm:$0xff] %v962
          %979 = vst [vmem:[%s343 + $0x70] sm:$0xff] %v963
          %980 = vst [vmem:[%s343 + $0x78] sm:$0xff] %v964
        $region60: #{tpu_custom_call.1} parent=39 // pred_fallthru
          _
        %s981 = sand.u32 %s170, 1
        %s982 = scalar_lea.sflag [#allocation5], %s981
        %s983 = sand.u32 %s170, 1
        %s984 = smul.addr %s983, 128
        %s985 = scalar_lea.vmem [#allocation9], %s984
        // Predicated region
        $region61: #{tpu_custom_call.1} parent=39 // pred_check
          %p986 = pneg %p180
        $region62: #{tpu_custom_call.1} parent=39 // pred_check_branch
          %988 = sbr.rel (%p986) target = $region64
        $region63: #{tpu_custom_call.1} parent=39 // pred_region
          %s990 = ssub.s32 2048, 2048
          %991 = vsyncadd %s982, %s990
          %s992 = smul.addr %s29, 16
          %s993 = smul.addr %s992, 128
          %s994 = scalar_lea.hbm %s5, %s993
          %s995 = sshll.u32 %s985, 4
          %s996 = int_to_ptr.vmem [resolvable:$true] %s995
          %1001 = dma.vmem_to_hbm [thread:$0]  %s996, 2048, %s994, %s982, 128, 128, 8
        $region64: #{tpu_custom_call.1} parent=39 // pred_fallthru
          _
      $region40: #{tpu_custom_call.1} parent=5 // pred_fallthru
        _
      %p1002 = scmp.le.s32.totalorder 2, %s20
      // Predicated region
      $region65: #{tpu_custom_call.1} parent=5 // pred_check
        %p1003 = pneg %p1002
      $region66: #{tpu_custom_call.1} parent=5 // pred_check_branch
        %1005 = sbr.rel (%p1003) target = $region68
      $region67: #{tpu_custom_call.1} parent=5 // pred_region
        %s1006 = ssub.s32 %s20, 2
        // Predicated region
        $region69: #{tpu_custom_call.1} parent=67 // pred_check
          %p1007 = pneg %p186
        $region70: #{tpu_custom_call.1} parent=67 // pred_check_branch
          %1009 = sbr.rel (%p1007) target = $region72
        $region71: #{tpu_custom_call.1} parent=67 // pred_region
          %s1010 = sand.u32 %s171, 1
          %s1011 = scalar_lea.sflag [#allocation5], %s1010
          %s1012 = sand.u32 %s171, 1
          %s1013 = smul.addr %s1012, 128
          %s1014 = scalar_lea.vmem [#allocation9], %s1013
          %1015 = dma.done %s1011, 2048
        $region72: #{tpu_custom_call.1} parent=67 // pred_fallthru
          _
      $region68: #{tpu_custom_call.1} parent=5 // pred_fallthru
        _
    $region6: #{tpu_custom_call.1} parent=1 // loop_footer
      %s24 = sadd.s32 1, %s20
    $region7: #{tpu_custom_call.1} parent=1 // loop_footer_branch
      %19 = sbr.rel target = $region3
    $region8: #{tpu_custom_call.1} parent=1 // loop_exit
      _
    %1016 = vsyncpa [#allocation4], 1
    %s1017 = scalar_lea.sflag [#allocation4], 1
    %1018 = vsyncpa %s1017, 1
    %1019 = vsyncpa [#allocation7], 1
    %s1020 = scalar_lea.sflag [#allocation7], 1
    %1021 = vsyncpa %s1020, 1
    %1022 = vsyncpa [#allocation5], 1
    %s1023 = scalar_lea.sflag [#allocation5], 1
    %1024 = vsyncpa %s1023, 1

</llo_original>
